<compile_context>
chip_gen: v7x
topology: tpu7x:2x2x1
jax: 0.10.0
libtpu: 0.0.40
codegen_flags: <defaults>
</compile_context>

<pallas_src>
import jax
import jax.numpy as jnp
from jax.experimental import pallas as pl
from jax.experimental.pallas import tpu as pltpu


_TARGET_BLOCK_BYTES = 2 * 1024 * 1024   # ~2 MiB blocks -> ~85% of HBM roofline
_VMEM_LIMIT_BYTES = 32 * 1024 * 1024    # safe on v5e/v6e (128 MiB) and v7x (64 MiB)


def _drop_path_kernel(scale_ref, x_ref, o_ref):
    # scale_ref: (TB, 1, 1) f32 per-sample scale (0.0 or 1/keep_prob), VMEM.
    # x_ref / o_ref: (TB, TN, LB) tile of the input / output.
    o_ref[...] = (x_ref[...].astype(jnp.float32) * scale_ref[...]).astype(o_ref.dtype)


def _canonical_view(shape):
    """Return (T, L, needs_flatten) for an array of shape (B, ...).

    If the trailing dim is lane-aligned (L % 128 == 0) keep it and only collapse
    the middle dims (layout-preserving). Otherwise flatten all per-sample
    features into the lane axis so blocks can be lane-dense 128-multiples.
    """
    F = 1
    for d in shape[1:]:
        F *= int(d)
    L = int(shape[-1]) if len(shape) > 1 else 1
    if L >= 128 and L % 128 == 0:
        return F // L, L, False
    return 1, F, True


def _plan_blocks(B, T, L, itemsize, target):
    """Pick (TB, TN, LB) honoring the (8, 128) block constraints, ~target bytes."""
    # Lane axis: take it whole when it fits, else a 128-multiple chunk
    # (only the final partial block is masked).
    if L * itemsize <= target or L <= 128:
        LB = L
    else:
        LB = max(128, (min(L, target // itemsize) // 128) * 128)
    rows = max(1, target // max(1, LB * itemsize))
    if rows >= T:
        TN = T                                   # full middle dim
        TB = min(B, max(1, rows // max(1, T)))   # pack multiple samples / block
    else:
        TB = 1
        if T <= 8:
            TN = T
        else:
            TN = min(T, max(8, (rows // 8) * 8))  # multiple of 8 sublanes
    return TB, TN, LB


def drop_path(x, rand, drop_prob, training=True, *,
              target_block_bytes=_TARGET_BLOCK_BYTES):
    """Pallas DropPath forward.

    x:    (B, ...) float array (e.g. (B, N, D) transformer tokens)
    rand: (B,) or (B, 1) uniform [0,1) draws (the torch.rand per-sample draw)
    """
    if drop_prob == 0.0 or not training or x.size == 0:
        return x
    keep_prob = 1.0 - drop_prob
    B = x.shape[0]

    # Keep/drop decision in x.dtype (matches torch's floor(keep_prob + rand)
    # computed in x.dtype), then one combined f32 scale per sample.
    r = rand.reshape(B).astype(x.dtype)
    mask = jnp.floor(jnp.asarray(keep_prob, dtype=x.dtype) + r)
    scale3 = (mask.astype(jnp.float32) / jnp.float32(keep_prob)).reshape(B, 1, 1)

    itemsize = jnp.dtype(x.dtype).itemsize
    T, L, flatten = _canonical_view(x.shape)
    if x.ndim == 3 and not flatten:
        x3 = x                       # native shape: no reshape, no relayout
    else:
        x3 = x.reshape(B, T, L)      # collapse non-minor dims (lane-aligned case)
                                     # or flatten features (fallback case)

    TB, TN, LB = _plan_blocks(B, T, L, itemsize, target_block_bytes)
    grid = (pl.cdiv(B, TB), pl.cdiv(T, TN), pl.cdiv(L, LB))

    out = pl.pallas_call(
        _drop_path_kernel,
        out_shape=jax.ShapeDtypeStruct((B, T, L), x.dtype),
        grid=grid,
        in_specs=[
            pl.BlockSpec((TB, 1, 1), lambda b, t, l: (b, 0, 0)),     # scales
            pl.BlockSpec((TB, TN, LB), lambda b, t, l: (b, t, l)),   # x tile
        ],
        out_specs=pl.BlockSpec((TB, TN, LB), lambda b, t, l: (b, t, l)),
        compiler_params=pltpu.CompilerParams(
            dimension_semantics=("parallel", "parallel", "parallel"),
            vmem_limit_bytes=_VMEM_LIMIT_BYTES),
        cost_estimate=pl.CostEstimate(
            flops=x.size,
            transcendentals=0,
            bytes_accessed=2 * x.size * itemsize + B * 4),
    )(scale3, x3)
    return out if out.shape == x.shape else out.reshape(x.shape)


def _reference(x, rand, drop_prob):
    """Pure-JAX reference of the exact PyTorch semantics."""
    keep_prob = 1.0 - drop_prob
    B = x.shape[0]
    r = rand.reshape((B,) + (1,) * (x.ndim - 1)).astype(x.dtype)
    mask = jnp.floor(jnp.asarray(keep_prob, dtype=x.dtype) + r)
    return (x / keep_prob) * mask


if __name__ == "__main__":
    drop_prob = 0.5
    key = jax.random.PRNGKey(0)
    kx, kr = jax.random.split(key)

    def check(shape, target=_TARGET_BLOCK_BYTES, tol=1e-6):
        b = shape[0]
        x = jax.random.normal(kx, shape, dtype=jnp.float32)
        rand = jax.random.uniform(kr, (b, 1), dtype=jnp.float32)
        out = jax.block_until_ready(
            drop_path(x, rand, drop_prob, training=True,
                      target_block_bytes=target))
        ref = _reference(x, rand, drop_prob)
        assert out.shape == x.shape and out.dtype == x.dtype
        assert jnp.allclose(out, ref, atol=tol, rtol=tol), shape

    # Lane-aligned native (B, N, D) path — no reshape at all.
    check((2, 8, 256))
    # 4-D input (video-style tokens): middle dims collapsed, trailing dim kept.
    check((2, 3, 5, 128))
    # Non-128-aligned trailing dim -> flattened lane axis fallback.
    check((2, 5, 7))
    # Small target forces a multi-step grid along the batch axis.
    check((4, 64, 256), target=64 * 1024)
    # Large odd per-sample feature count -> 128-multiple lane blocks + masked tail.
    check((2, 4, 20000), target=64 * 1024)

    # Eval / drop_prob == 0 paths are the identity.
    x = jax.random.normal(kx, (2, 8, 256), dtype=jnp.float32)
    rand = jax.random.uniform(kr, (2, 1), dtype=jnp.float32)
    assert jnp.array_equal(drop_path(x, rand, drop_prob, training=False), x)
    assert jnp.array_equal(drop_path(x, rand, 0.0, training=True), x)

    print("KERNEL_OK")
</pallas_src>

<mosaic_0001>
module attributes {stable_mosaic.version = 11 : i64} {
  func.func @_drop_path_kernel(%arg0: i32, %arg1: i32, %arg2: i32, %arg3: memref<2x1x1xf32, #tpu.memory_space<vmem>>, %arg4: memref<2x8x256xf32, #tpu.memory_space<vmem>>, %arg5: memref<2x8x256xf32, #tpu.memory_space<vmem>>) attributes {dimension_semantics = [#tpu.dimension_semantics<parallel>, #tpu.dimension_semantics<parallel>, #tpu.dimension_semantics<parallel>], iteration_bounds = array<i64: 1, 1, 1>, scalar_prefetch = 0 : i64, scratch_operands = 0 : i64, tpu.core_type = #tpu.core_type<tc>, window_params = [{transform_indices = @transform_0, window_bounds = array<i64: 2, 1, 1>}, {transform_indices = @transform_1, window_bounds = array<i64: 2, 8, 256>}, {transform_indices = @transform_2, window_bounds = array<i64: 2, 8, 256>}]} {
    %c0 = arith.constant 0 : index
    %c0_0 = arith.constant 0 : index
    %c0_1 = arith.constant 0 : index
    %0 = vector.load %arg4[%c0, %c0_0, %c0_1] : memref<2x8x256xf32, #tpu.memory_space<vmem>>, vector<2x8x256xf32>
    %c0_2 = arith.constant 0 : index
    %c0_3 = arith.constant 0 : index
    %c0_4 = arith.constant 0 : index
    %1 = vector.load %arg3[%c0_2, %c0_3, %c0_4] : memref<2x1x1xf32, #tpu.memory_space<vmem>>, vector<2x1x1xf32>
    %2 = vector.broadcast %1 : vector<2x1x1xf32> to vector<2x8x256xf32>
    %3 = arith.mulf %0, %2 : vector<2x8x256xf32>
    %c0_5 = arith.constant 0 : index
    %c0_6 = arith.constant 0 : index
    %c0_7 = arith.constant 0 : index
    %4 = vector.load %arg5[%c0_5, %c0_6, %c0_7] : memref<2x8x256xf32, #tpu.memory_space<vmem>>, vector<2x8x256xf32>
    tpu.vector_store %arg5[%c0_5, %c0_6, %c0_7], %3 {strides = array<i32>} : memref<2x8x256xf32, #tpu.memory_space<vmem>>, vector<2x8x256xf32>,
    return
  }
  func.func @transform_0(%arg0: i32, %arg1: i32, %arg2: i32) -> (i32, i32, i32) {
    %c0_i32 = arith.constant 0 : i32
    %c0_i32_0 = arith.constant 0 : i32
    %c0_i32_1 = arith.constant 0 : i32
    return %arg0, %c0_i32, %c0_i32_0 : i32, i32, i32
  }
  func.func @transform_1(%arg0: i32, %arg1: i32, %arg2: i32) -> (i32, i32, i32) {
    %c0_i32 = arith.constant 0 : i32
    return %arg0, %arg1, %arg2 : i32, i32, i32
  }
  func.func @transform_2(%arg0: i32, %arg1: i32, %arg2: i32) -> (i32, i32, i32) {
    %c0_i32 = arith.constant 0 : i32
    return %arg0, %arg1, %arg2 : i32, i32, i32
  }
}

</mosaic_0001>

<llo_original>
// kernel: tpu_custom_call.1
$region0: #{tpu_custom_call.1}
  #allocation0 [shape = 'u32[]', space=smem, size = 0x4, offset = 0x4, fixed_abs, tag = 'smem constant byte address 0x4 - core index']
  #allocation1 [shape = 'u32[144,128]{1,0:T(1,128)}', space=vmem, size = 0x12000, scoped, tag = 'internal scratch']
  %s0 = inlined_call_operand.vmem [shape: f32[2,1,1], index: 0, kind: input, shape index: {}]
  %s1 = inlined_call_operand.hbm [shape: f32[2,8,256], index: 1, kind: input, shape index: {}]
  %s2 = inlined_call_operand.hbm [shape: f32[2,8,256], index: 2, kind: output, shape index: {}]
  %s3 = sld [smem:[#allocation0]]
  $region22: #{tpu_custom_call.1} parent=0
    _
  %s5 = ssub.s32 1, %s3
  %s6 = scalar_select 0, %s5, %s3
  $region1: #{tpu_custom_call.1} parent=0
    #allocation2 [shape = 'u8[16384]{0}', space=vmem, size = 0x4000, scoped, tag = 'input window, operand 1, single buffered']
    #allocation3 [shape = 's32[1]{0}', space=sflag, size = 0x4, scoped, tag = 'scoped memory for tpu_custom_call.1']
    #allocation4 [shape = 's32[1]{0}', space=sflag, size = 0x4, scoped, tag = 'scoped memory for tpu_custom_call.1']
    #allocation5 [shape = 'u8[16384]{0}', space=vmem, size = 0x4000, scoped, tag = 'output window, operand 0, single buffered']
    %7 = vsyncpa [#allocation3], 0
    %8 = vsyncpa [#allocation4], 0
    // Predicated region
    $region2: #{tpu_custom_call.1} parent=1 // pred_check
      _
    $region3: #{tpu_custom_call.1} parent=1 // pred_check_branch
      %10 = sbr.rel (0) target = $region5
    $region4: #{tpu_custom_call.1} parent=1 // pred_region
      _
    $region5: #{tpu_custom_call.1} parent=1 // pred_fallthru
      _
    // Predicated region
    $region6: #{tpu_custom_call.1} parent=1 // pred_check
      _
    $region7: #{tpu_custom_call.1} parent=1 // pred_check_branch
      %12 = sbr.rel (0) target = $region9
    $region8: #{tpu_custom_call.1} parent=1 // pred_region
      %s14 = ssub.s32 512, 512
      %15 = vsyncadd [#allocation3], %s14
      %s16 = sshll.u32 [#allocation2], 4
      %s17 = int_to_ptr.vmem [resolvable:$true] %s16
      %22 = dma.hbm_to_vmem [thread:$0]  %s1, 512, %s17, [#allocation3], 256, 256, 16
    $region9: #{tpu_custom_call.1} parent=1 // pred_fallthru
      _
    // Predicated region
    $region10: #{tpu_custom_call.1} parent=1 // pred_check
      _
    $region11: #{tpu_custom_call.1} parent=1 // pred_check_branch
      %24 = sbr.rel (0) target = $region13
    $region12: #{tpu_custom_call.1} parent=1 // pred_region
      %25 = dma.done [#allocation3], 512
    $region13: #{tpu_custom_call.1} parent=1 // pred_fallthru
      _
    %v26 = vld [vmem:[#allocation2] sm:$0xff]
    %v27 = vld [vmem:[#allocation2 + $0x8] sm:$0xff]
    %v28 = vld [vmem:[#allocation2 + $0x10] sm:$0xff]
    %v29 = vld [vmem:[#allocation2 + $0x18] sm:$0xff]
    %v30 = vld [vmem:[%s0] sm:$0x1]
    %v31 = vld [vmem:[%s0 + $0x1] sm:$0x1]
    %v34 = vlaneseq
    %v35 = vshrl.u32 %v34, 7
    %v36 = vsub.s32 0, %v35
    %v37 = vrot.slane %v30, %v36
    %v38 = vlaneseq
    %v39 = vshrl.u32 %v38, 7
    %v40 = vsub.s32 0, %v39
    %v41 = vrot.slane %v31, %v40
    %42 = vset.pattern.permute.xlu0 0
    %43 = vperm.xlu0 %42, %v37
    %v44 = vpop.permute.xlu0 %43
    %46 = vset.pattern.permute.xlu0 0
    %47 = vperm.xlu0 %46, %v41
    %v48 = vpop.permute.xlu0 %47
    %v50 = vmul.f32 %v26, %v44
    %v51 = vmul.f32 %v27, %v44
    %v52 = vmul.f32 %v28, %v48
    %v53 = vmul.f32 %v29, %v48
    %54 = vst [vmem:[#allocation5] sm:$0xff] %v50
    %55 = vst [vmem:[#allocation5 + $0x8] sm:$0xff] %v51
    %56 = vst [vmem:[#allocation5 + $0x10] sm:$0xff] %v52
    %57 = vst [vmem:[#allocation5 + $0x18] sm:$0xff] %v53
    // Predicated region
    $region14: #{tpu_custom_call.1} parent=1 // pred_check
      _
    $region15: #{tpu_custom_call.1} parent=1 // pred_check_branch
      %59 = sbr.rel (0) target = $region17
    $region16: #{tpu_custom_call.1} parent=1 // pred_region
      %s61 = ssub.s32 512, 512
      %62 = vsyncadd [#allocation4], %s61
      %s63 = sshll.u32 [#allocation5], 4
      %s64 = int_to_ptr.vmem [resolvable:$true] %s63
      %69 = dma.vmem_to_hbm [thread:$0]  %s64, 512, %s2, [#allocation4], 256, 256, 16
    $region17: #{tpu_custom_call.1} parent=1 // pred_fallthru
      _
    // Predicated region
    $region18: #{tpu_custom_call.1} parent=1 // pred_check
      _
    $region19: #{tpu_custom_call.1} parent=1 // pred_check_branch
      %71 = sbr.rel (0) target = $region21
    $region20: #{tpu_custom_call.1} parent=1 // pred_region
      %72 = dma.done [#allocation4], 512
    $region21: #{tpu_custom_call.1} parent=1 // pred_fallthru
      _
    %73 = vsyncpa [#allocation3], 1
    %74 = vsyncpa [#allocation4], 1

</llo_original>
